<compile_context>
chip_gen: v6e
topology: v6e:2x2x1
jax: 0.10.0
libtpu: 0.0.40
codegen_flags: <defaults>
</compile_context>

<pallas_src>
import functools

import jax
import jax.numpy as jnp
from jax.experimental import pallas as pl
from jax.experimental.pallas import tpu as pltpu


def _round_up(x: int, m: int) -> int:
    return (x + m - 1) // m * m


def _vmem_capacity_bytes() -> int:
    try:
        return int(pltpu.get_tpu_info().vmem_capacity_bytes)
    except Exception:
        return 64 * 1024 * 1024  # conservative fallback (v7x per-TC VMEM)


def _pick_row_tile(M: int, per_row_bytes: int, fixed_bytes: int, budget: int) -> int:
    """Largest row tile (multiple of 8, <=4096) fitting the VMEM budget."""
    M8 = _round_up(max(M, 1), 8)
    tm = 4096
    while tm > 8 and fixed_bytes + tm * per_row_bytes > budget:
        tm //= 2
    TM = min(tm, M8)
    # Guarantee >= 2 row tiles when rows allow, so the "parallel" row axis
    # can be sharded across both TensorCores on v7x megacore.
    if TM >= M8 and M8 > 8:
        TM = _round_up((M8 + 1) // 2, 8)
    return TM


# ---------- Path A: weight fully VMEM-resident, 1-D pipelined row grid ----------
def _residual_linear_kernel(x_ref, w_ref, b_ref, o_ref, *, input_factor, mxu_dtype):
    # x_ref: (TM, D)   w_ref: (D, D) pre-scaled, mxu_dtype   b_ref: (1, D) f32
    x = x_ref[...]
    y = jnp.dot(x.astype(mxu_dtype), w_ref[...], preferred_element_type=jnp.float32)
    y = y + b_ref[...]
    res = x.astype(jnp.float32)
    if input_factor != 1.0:                 # static Python branch (closure constant)
        res = res * jnp.float32(input_factor)
    o_ref[...] = (y + res).astype(o_ref.dtype)


# ---------- Path B: output-column tiling, weight streamed in (Np, TN) slabs ----------
def _residual_linear_ntiled_kernel(x_ref, xr_ref, w_ref, b_ref, o_ref, *,
                                   input_factor, mxu_dtype):
    # x_ref: (TM, Np) full-K rows   xr_ref: (TM, TN) residual columns
    # w_ref: (Np, TN)               b_ref: (1, TN) f32
    y = jnp.dot(x_ref[...].astype(mxu_dtype), w_ref[...],
                preferred_element_type=jnp.float32)
    y = y + b_ref[...]
    res = xr_ref[...].astype(jnp.float32)
    if input_factor != 1.0:
        res = res * jnp.float32(input_factor)
    o_ref[...] = (y + res).astype(o_ref.dtype)


def residual_connection_linear(x, w, b, *, module_factor=1.0, input_factor=1.0,
                               mxu_dtype=None, column_tile_n=None):
    """Fused: (x @ w + b) * module_factor + x * input_factor.

    x: (B, T, D)   w: (D, D)   b: (D,)
    mxu_dtype:     dtype fed to the MXU. Default: bfloat16 for f32 inputs when
                   D >= 256 (compute-bound), else x.dtype. f32 accumulation and
                   f32 bias/residual are always kept.
    column_tile_n: force the column-tiled (streamed-weight) path with this TN
                   (multiple of 128). None = automatic.
    """
    B, T, D = x.shape
    M = B * T
    out_dtype = x.dtype
    module_factor = float(module_factor)
    input_factor = float(input_factor)

    if mxu_dtype is None:
        mxu_dtype = jnp.bfloat16 if (x.dtype == jnp.float32 and D >= 256) else x.dtype

    in_bytes = jnp.dtype(x.dtype).itemsize
    out_bytes = jnp.dtype(out_dtype).itemsize
    w_bytes = jnp.dtype(mxu_dtype).itemsize

    vmem_cap = _vmem_capacity_bytes()                      # 128 MiB v5e/v6e, 64 MiB v7x
    budget = max(int(vmem_cap * 0.45), 16 * 1024 * 1024)   # tile-selection budget
    vmem_limit = max(int(vmem_cap * 0.75), 32 * 1024 * 1024)

    # Fold module_factor into the wrapped Linear's parameters (one time).
    w_s = (w.astype(jnp.float32) * module_factor).astype(mxu_dtype)
    b_s = (b.astype(jnp.float32) * module_factor).reshape(1, D)
    x2d = x.reshape(M, D)

    # Resident weight + bias, including the default double buffer.
    resident_w = 2 * (D * D * w_bytes + D * 4)
    use_ntiling = (column_tile_n is not None) or (resident_w > budget // 2)

    if not use_ntiling:
        # ---------------- Path A ----------------
        TM = _pick_row_tile(M, 2 * D * (in_bytes + out_bytes), resident_w, budget)
        Mp = _round_up(M, TM)
        if Mp != M:
            x2d = jnp.pad(x2d, ((0, Mp - M), (0, 0)))

        kernel = functools.partial(_residual_linear_kernel,
                                   input_factor=input_factor, mxu_dtype=mxu_dtype)
        cost = pl.CostEstimate(
            flops=2 * M * D * D,
            transcendentals=0,
            bytes_accessed=M * D * (in_bytes + out_bytes) + D * D * w_bytes + D * 4)

        out2d = pl.pallas_call(
            kernel,
            out_shape=jax.ShapeDtypeStruct((Mp, D), out_dtype),
            grid_spec=pltpu.PrefetchScalarGridSpec(
                num_scalar_prefetch=0,
                grid=(Mp // TM,),
                in_specs=[
                    pl.BlockSpec((TM, D), lambda i: (i, 0)),   # x row tile (pipelined)
                    pl.BlockSpec((D, D), lambda i: (0, 0)),    # W: VMEM-resident
                    pl.BlockSpec((1, D), lambda i: (0, 0)),    # b: VMEM-resident
                ],
                out_specs=pl.BlockSpec((TM, D), lambda i: (i, 0)),
            ),
            compiler_params=pltpu.CompilerParams(
                dimension_semantics=("parallel",),
                vmem_limit_bytes=vmem_limit,
            ),
            cost_estimate=cost,
        )(x2d, w_s, b_s)
    else:
        # ---------------- Path B ----------------
        if column_tile_n is not None:
            TN = int(column_tile_n)
            assert TN % 128 == 0, "column_tile_n must be a multiple of 128"
        else:
            TN = 128
            for cand in (512, 256, 128):
                if 2 * _round_up(D, cand) * cand * w_bytes <= budget // 3:
                    TN = cand
                    break
        Np = _round_up(D, TN)
        if Np != D:   # only in this large-D path; usually a no-op (D % 128 == 0)
            x2d = jnp.pad(x2d, ((0, 0), (0, Np - D)))
            w_s = jnp.pad(w_s, ((0, Np - D), (0, Np - D)))
            b_s = jnp.pad(b_s, ((0, 0), (0, Np - D)))

        fixed = 2 * (Np * TN * w_bytes + TN * 4)                    # W + b slabs (x2 buf)
        per_row = 2 * Np * in_bytes + 2 * TN * (in_bytes + out_bytes)
        TM = _pick_row_tile(M, per_row, fixed, budget)
        Mp = _round_up(M, TM)
        if Mp != M:
            x2d = jnp.pad(x2d, ((0, Mp - M), (0, 0)))

        n_row_tiles = Mp // TM
        kernel = functools.partial(_residual_linear_ntiled_kernel,
                                   input_factor=input_factor, mxu_dtype=mxu_dtype)
        cost = pl.CostEstimate(
            flops=2 * M * D * D,
            transcendentals=0,
            bytes_accessed=(2 * Mp * Np * in_bytes + Mp * Np * out_bytes
                            + n_row_tiles * Np * Np * w_bytes + Np * 4))

        out2d = pl.pallas_call(
            kernel,
            out_shape=jax.ShapeDtypeStruct((Mp, Np), out_dtype),
            grid_spec=pltpu.PrefetchScalarGridSpec(
                num_scalar_prefetch=0,
                grid=(n_row_tiles, Np // TN),
                in_specs=[
                    pl.BlockSpec((TM, Np), lambda i, j: (i, 0)),   # x rows (full K), matmul
                    pl.BlockSpec((TM, TN), lambda i, j: (i, j)),   # x column slab (residual)
                    pl.BlockSpec((Np, TN), lambda i, j: (0, j)),   # streamed weight slab
                    pl.BlockSpec((1, TN), lambda i, j: (0, j)),    # bias slab
                ],
                out_specs=pl.BlockSpec((TM, TN), lambda i, j: (i, j)),
            ),
            compiler_params=pltpu.CompilerParams(
                dimension_semantics=("parallel", "arbitrary"),
                vmem_limit_bytes=vmem_limit,
            ),
            cost_estimate=cost,
        )(x2d, x2d, w_s, b_s)
        if Np != D:
            out2d = out2d[:, :D]

    if Mp != M:
        out2d = out2d[:M]
    return out2d.reshape(B, T, D)


if __name__ == "__main__":
    key = jax.random.PRNGKey(0)

    # --- Case 1: small Conformer-like shapes, f32 MXU path ---
    B, T, D = 2, 8, 32
    kx, kw, kb, k2, k3 = jax.random.split(key, 5)
    x = jax.random.normal(kx, (B, T, D), dtype=jnp.float32)
    w = jax.random.normal(kw, (D, D), dtype=jnp.float32) * (1.0 / jnp.sqrt(D))
    b = jax.random.normal(kb, (D,), dtype=jnp.float32) * 0.01

    module_factor, input_factor = 0.5, 1.0
    out = residual_connection_linear(x, w, b, module_factor=module_factor,
                                     input_factor=input_factor)
    out = jax.block_until_ready(out)
    ref = (x @ w + b) * module_factor + x * input_factor
    assert out.shape == (B, T, D)
    assert jnp.allclose(out, ref, atol=1e-5, rtol=1e-5)

    # --- Case 2: non-aligned rows and D=144 (no feature-dim padding needed) ---
    B2, T2, D2 = 2, 9, 144
    kx2, kw2, kb2 = jax.random.split(k2, 3)
    x2 = jax.random.normal(kx2, (B2, T2, D2), dtype=jnp.float32)
    w2 = jax.random.normal(kw2, (D2, D2), dtype=jnp.float32) * (1.0 / jnp.sqrt(D2))
    b2 = jax.random.normal(kb2, (D2,), dtype=jnp.float32) * 0.01
    out2 = residual_connection_linear(x2, w2, b2, module_factor=0.5, input_factor=1.0)
    out2 = jax.block_until_ready(out2)
    ref2 = (x2 @ w2 + b2) * 0.5 + x2 * 1.0
    assert out2.shape == (B2, T2, D2)
    assert jnp.allclose(out2, ref2, atol=1e-4, rtol=1e-4)

    # --- Case 3: D=256 -> automatic bf16 MXU operands (f32 accumulation/residual) ---
    B3, T3, D3 = 2, 16, 256
    kx3, kw3, kb3, k4 = jax.random.split(k3, 4)
    x3 = jax.random.normal(kx3, (B3, T3, D3), dtype=jnp.float32)
    w3 = jax.random.normal(kw3, (D3, D3), dtype=jnp.float32) * (1.0 / jnp.sqrt(D3))
    b3 = jax.random.normal(kb3, (D3,), dtype=jnp.float32) * 0.01
    out3 = residual_connection_linear(x3, w3, b3, module_factor=0.5, input_factor=1.0)
    out3 = jax.block_until_ready(out3)
    ref3 = (x3 @ w3 + b3) * 0.5 + x3 * 1.0
    assert out3.shape == (B3, T3, D3)
    assert jnp.allclose(out3, ref3, atol=3e-2, rtol=3e-2)

    # --- Case 4: forced column-tiled (streamed weight) path, f32 MXU ---
    out4 = residual_connection_linear(x3, w3, b3, module_factor=0.5, input_factor=1.0,
                                      mxu_dtype=jnp.float32, column_tile_n=128)
    out4 = jax.block_until_ready(out4)
    assert out4.shape == (B3, T3, D3)
    assert jnp.allclose(out4, ref3, atol=1e-4, rtol=1e-4)

    print("KERNEL_OK")
</pallas_src>

<mosaic_0001>
module attributes {stable_mosaic.version = 11 : i64} {
  func.func @_residual_linear_kernel(%arg0: i32, %arg1: memref<8x32xf32, #tpu.memory_space<vmem>>, %arg2: memref<32x32xf32, #tpu.memory_space<vmem>>, %arg3: memref<1x32xf32, #tpu.memory_space<vmem>>, %arg4: memref<8x32xf32, #tpu.memory_space<vmem>>) attributes {dimension_semantics = [#tpu.dimension_semantics<parallel>], iteration_bounds = array<i64: 2>, scalar_prefetch = 0 : i64, scratch_operands = 0 : i64, tpu.core_type = #tpu.core_type<tc>, window_params = [{transform_indices = @transform_0, window_bounds = array<i64: 8, 32>}, {pipeline_mode = #tpu.pipeline_mode<synchronous>, transform_indices = @transform_1, window_bounds = array<i64: 32, 32>}, {pipeline_mode = #tpu.pipeline_mode<synchronous>, transform_indices = @transform_2, window_bounds = array<i64: 1, 32>}, {transform_indices = @transform_3, window_bounds = array<i64: 8, 32>}]} {
    %c0 = arith.constant 0 : index
    %c0_0 = arith.constant 0 : index
    %0 = vector.load %arg1[%c0, %c0_0] : memref<8x32xf32, #tpu.memory_space<vmem>>, vector<8x32xf32>
    %c0_1 = arith.constant 0 : index
    %c0_2 = arith.constant 0 : index
    %1 = vector.load %arg2[%c0_1, %c0_2] : memref<32x32xf32, #tpu.memory_space<vmem>>, vector<32x32xf32>
    %cst = arith.constant dense<0.000000e+00> : vector<8x32xf32>
    %2 = tpu.matmul %0, %1, %cst {dimension_numbers = #tpu.dot_dimension_numbers<[1], [0], [0], [1], [0, 0, 1, 1], [], []>} : vector<8x32xf32>, vector<32x32xf32>, vector<8x32xf32> -> vector<8x32xf32>
    %c0_3 = arith.constant 0 : index
    %c0_4 = arith.constant 0 : index
    %3 = vector.load %arg3[%c0_3, %c0_4] : memref<1x32xf32, #tpu.memory_space<vmem>>, vector<1x32xf32>
    %4 = vector.broadcast %3 : vector<1x32xf32> to vector<8x32xf32>
    %5 = arith.addf %2, %4 : vector<8x32xf32>
    %6 = arith.addf %5, %0 : vector<8x32xf32>
    %c0_5 = arith.constant 0 : index
    %c0_6 = arith.constant 0 : index
    %7 = vector.load %arg4[%c0_5, %c0_6] : memref<8x32xf32, #tpu.memory_space<vmem>>, vector<8x32xf32>
    tpu.vector_store %arg4[%c0_5, %c0_6], %6 {strides = array<i32>} : memref<8x32xf32, #tpu.memory_space<vmem>>, vector<8x32xf32>,
    return
  }
  func.func @transform_0(%arg0: i32) -> (i32, i32) {
    %c0_i32 = arith.constant 0 : i32
    %c0_i32_0 = arith.constant 0 : i32
    return %arg0, %c0_i32 : i32, i32
  }
  func.func @transform_1(%arg0: i32) -> (i32, i32) {
    %c0_i32 = arith.constant 0 : i32
    %c0_i32_0 = arith.constant 0 : i32
    %c0_i32_1 = arith.constant 0 : i32
    return %c0_i32, %c0_i32_0 : i32, i32
  }
  func.func @transform_2(%arg0: i32) -> (i32, i32) {
    %c0_i32 = arith.constant 0 : i32
    %c0_i32_0 = arith.constant 0 : i32
    %c0_i32_1 = arith.constant 0 : i32
    return %c0_i32, %c0_i32_0 : i32, i32
  }
  func.func @transform_3(%arg0: i32) -> (i32, i32) {
    %c0_i32 = arith.constant 0 : i32
    %c0_i32_0 = arith.constant 0 : i32
    return %arg0, %c0_i32 : i32, i32
  }
}

</mosaic_0001>

<llo_original>
// kernel: tpu_custom_call.1
$region0: #{tpu_custom_call.1}
  #allocation0 [shape = 'u32[]', space=smem, size = 0x4, offset = 0x4, fixed_abs, tag = 'smem constant byte address 0x4 - core index']
  #allocation1 [shape = 'u32[144,128]{1,0:T(1,128)}', space=vmem, size = 0x12000, scoped, tag = 'internal scratch']
  %s0 = inlined_call_operand.hbm [shape: f32[16,32], index: 0, kind: input, shape index: {}]
  %s1 = inlined_call_operand.hbm [shape: f32[32,32], index: 1, kind: input, shape index: {}]
  %s2 = inlined_call_operand.vmem [shape: f32[1,32], index: 2, kind: input, shape index: {}]
  %s3 = inlined_call_operand.hbm [shape: f32[16,32], index: 3, kind: output, shape index: {}]
  %s4 = sld [smem:[#allocation0]]
  $region53: #{tpu_custom_call.1} parent=0
    _
  %s6 = ssub.s32 1, %s4
  %s7 = scalar_select 0, %s6, %s4
  $region1: #{tpu_custom_call.1} parent=0
    #allocation2 [shape = 'u8[8192]{0}', space=vmem, size = 0x2000, scoped, tag = 'input window, operand 0']
    #allocation3 [shape = 's32[2]{0}', space=sflag, size = 0x8, scoped, tag = 'scoped memory for tpu_custom_call.1']
    #allocation4 [shape = 's32[2]{0}', space=sflag, size = 0x8, scoped, tag = 'scoped memory for tpu_custom_call.1']
    #allocation5 [shape = 'u8[16384]{0}', space=vmem, size = 0x4000, scoped, tag = 'input window, operand 1, single buffered']
    #allocation6 [shape = 's32[1]{0}', space=sflag, size = 0x4, scoped, tag = 'scoped memory for tpu_custom_call.1']
    #allocation7 [shape = 'u8[8192]{0}', space=vmem, size = 0x2000, scoped, tag = 'output window, operand 0']
    %8 = vsyncpa [#allocation3], 0
    %s9 = scalar_lea.sflag [#allocation3], 1
    %10 = vsyncpa %s9, 0
    %11 = vsyncpa [#allocation6], 0
    %12 = vsyncpa [#allocation4], 0
    %s13 = scalar_lea.sflag [#allocation4], 1
    %14 = vsyncpa %s13, 0
    loop: start=0, step=1, limit=4
    $region2: #{tpu_custom_call.1} parent=1 // loop_pre_header
      _
    $region3: #{tpu_custom_call.1} parent=1 // loop_header
      %s16 = sphi 0, %s20
      %p17 = scmp.ge.s32.totalorder %s16, 4
      %s26 = sphi 0, %s28
      %s29 = sphi 0, %s26
      %s30 = sphi 0, %s29
      %s46 = sphi 0, %s30
      %s50 = sphi 0, %s50
      %s52 = sphi 0, %s50
      %s53 = sphi 0, %s52
      %s67 = sphi 0, %s53
      %s71 = sphi 0, %s71
      %s73 = sphi 0, %s71
      %s74 = sphi 0, %s73
      %s88 = sphi 0, %s74
      %s94 = sphi 0, %s96
      %s97 = sphi 0, %s94
      %s98 = sphi 0, %s97
      %s114 = sphi 0, %s98
    $region4: #{tpu_custom_call.1} parent=1 // loop_header_branch
      %19 = sbr.rel (%p17) target = $region8
    $region5: #{tpu_custom_call.1} parent=1 // loop_body
      %s21 = ssub.s32 %s16, 1
      %s22 = ssub.s32 %s16, 2
      %s23 = sadd.s32 %s16, 1
      %s24 = ssub.s32 %s16, %s23
      %p25 = scmp.eq.s32.totalorder %s24, 0
      %s27 = sadd.s32 %s26, 1
      %s28 = scalar_select %p25, %s26, %s27
      %p31 = pneg %p25
      %p32 = scmp.eq.s32.totalorder %s16, 1
      %p33 = por %p31, %p32
      %p34 = scmp.ne.s32.totalorder %s26, %s29
      %p35 = scmp.eq.s32.totalorder %s16, 0
      %p36 = por %p34, %p35
      %p37 = scmp.ne.s32.totalorder %s26, %s29
      %p38 = scmp.eq.s32.totalorder %s21, 1
      %p39 = por %p37, %p38
      %p40 = scmp.ne.s32.totalorder %s29, %s30
      %p41 = scmp.eq.s32.totalorder %s21, 0
      %p42 = por %p40, %p41
      %p43 = scmp.ne.s32.totalorder %s29, %s30
      %p44 = scmp.eq.s32.totalorder %s22, 1
      %p45 = por %p43, %p44
      %p47 = scmp.ne.s32.totalorder %s30, %s46
      %p48 = scmp.eq.s32.totalorder %s22, 0
      %p49 = por %p47, %p48
      %s51 = sadd.s32 %s50, 1
      %p54 = scmp.eq.s32.totalorder %s16, 1
      %p55 = scmp.ne.s32.totalorder %s50, %s52
      %p56 = scmp.eq.s32.totalorder %s16, 0
      %p57 = por %p55, %p56
      %p58 = scmp.ne.s32.totalorder %s50, %s52
      %p59 = scmp.eq.s32.totalorder %s21, 1
      %p60 = por %p58, %p59
      %p61 = scmp.ne.s32.totalorder %s52, %s53
      %p62 = scmp.eq.s32.totalorder %s21, 0
      %p63 = por %p61, %p62
      %p64 = scmp.ne.s32.totalorder %s52, %s53
      %p65 = scmp.eq.s32.totalorder %s22, 1
      %p66 = por %p64, %p65
      %p68 = scmp.ne.s32.totalorder %s53, %s67
      %p69 = scmp.eq.s32.totalorder %s22, 0
      %p70 = por %p68, %p69
      %s72 = sadd.s32 %s71, 1
      %p75 = scmp.eq.s32.totalorder %s16, 1
      %p76 = scmp.ne.s32.totalorder %s71, %s73
      %p77 = scmp.eq.s32.totalorder %s16, 0
      %p78 = por %p76, %p77
      %p79 = scmp.ne.s32.totalorder %s71, %s73
      %p80 = scmp.eq.s32.totalorder %s21, 1
      %p81 = por %p79, %p80
      %p82 = scmp.ne.s32.totalorder %s73, %s74
      %p83 = scmp.eq.s32.totalorder %s21, 0
      %p84 = por %p82, %p83
      %p85 = scmp.ne.s32.totalorder %s73, %s74
      %p86 = scmp.eq.s32.totalorder %s22, 1
      %p87 = por %p85, %p86
      %p89 = scmp.ne.s32.totalorder %s74, %s88
      %p90 = scmp.eq.s32.totalorder %s22, 0
      %p91 = por %p89, %p90
      %s92 = ssub.s32 %s16, %s23
      %p93 = scmp.eq.s32.totalorder %s92, 0
      %s95 = sadd.s32 %s94, 1
      %s96 = scalar_select %p93, %s94, %s95
      %p99 = pneg %p93
      %p100 = scmp.eq.s32.totalorder %s16, 1
      %p101 = por %p99, %p100
      %p102 = scmp.ne.s32.totalorder %s94, %s97
      %p103 = scmp.eq.s32.totalorder %s16, 0
      %p104 = por %p102, %p103
      %p105 = scmp.ne.s32.totalorder %s94, %s97
      %p106 = scmp.eq.s32.totalorder %s21, 1
      %p107 = por %p105, %p106
      %p108 = scmp.ne.s32.totalorder %s97, %s98
      %p109 = scmp.eq.s32.totalorder %s21, 0
      %p110 = por %p108, %p109
      %p111 = scmp.ne.s32.totalorder %s97, %s98
      %p112 = scmp.eq.s32.totalorder %s22, 1
      %p113 = por %p111, %p112
      %p115 = scmp.ne.s32.totalorder %s98, %s114
      %p116 = scmp.eq.s32.totalorder %s22, 0
      %p117 = por %p115, %p116
      %p118 = scmp.le.s32.totalorder 1, %s16
      %p119 = scmp.lt.s32.totalorder %s16, 3
      %p120 = pnand %p118, %p119
      %p121 = pneg %p120
      // Predicated region
      $region9: #{tpu_custom_call.1} parent=5 // pred_check
        _
      $region10: #{tpu_custom_call.1} parent=5 // pred_check_branch
        %123 = sbr.rel (%p120) target = $region12
      $region11: #{tpu_custom_call.1} parent=5 // pred_region
        %s124 = ssub.s32 %s16, 1
        // Predicated region
        $region13: #{tpu_custom_call.1} parent=11 // pred_check
          %p125 = pneg %p63
        $region14: #{tpu_custom_call.1} parent=11 // pred_check_branch
          %127 = sbr.rel (%p125) target = $region16
        $region15: #{tpu_custom_call.1} parent=11 // pred_region
          %s129 = ssub.s32 512, 512
          %130 = vsyncadd [#allocation6], %s129
          %s131 = sshll.u32 [#allocation5], 4
          %s132 = int_to_ptr.vmem [resolvable:$true] %s131
          %137 = dma.hbm_to_vmem [thread:$0]  %s1, 512, %s132, [#allocation6], 128, 128, 8
        $region16: #{tpu_custom_call.1} parent=11 // pred_fallthru
          _
        // Predicated region
        $region17: #{tpu_custom_call.1} parent=11 // pred_check
          %p138 = pneg %p84
        $region18: #{tpu_custom_call.1} parent=11 // pred_check_branch
          %140 = sbr.rel (%p138) target = $region20
        $region19: #{tpu_custom_call.1} parent=11 // pred_region
          _
        $region20: #{tpu_custom_call.1} parent=11 // pred_fallthru
          _
      $region12: #{tpu_custom_call.1} parent=5 // pred_fallthru
        _
      %p141 = scmp.lt.s32.totalorder %s16, 2
      // Predicated region
      $region21: #{tpu_custom_call.1} parent=5 // pred_check
        %p142 = pneg %p141
      $region22: #{tpu_custom_call.1} parent=5 // pred_check_branch
        %144 = sbr.rel (%p142) target = $region24
      $region23: #{tpu_custom_call.1} parent=5 // pred_region
        // Predicated region
        $region25: #{tpu_custom_call.1} parent=23 // pred_check
          %p145 = pneg %p36
        $region26: #{tpu_custom_call.1} parent=23 // pred_check_branch
          %147 = sbr.rel (%p145) target = $region28
        $region27: #{tpu_custom_call.1} parent=23 // pred_region
          %s148 = sand.u32 %s26, 1
          %s149 = scalar_lea.sflag [#allocation3], %s148
          %s150 = sand.u32 %s26, 1
          %s151 = smul.addr %s150, 8
          %s152 = scalar_lea.vmem [#allocation2], %s151
          %s154 = ssub.s32 128, 128
          %155 = vsyncadd %s149, %s154
          %s156 = smul.addr %s16, 128
          %s157 = scalar_lea.hbm %s0, %s156
          %s159 = sshll.u32 %s152, 4
          %s160 = int_to_ptr.vmem [resolvable:$true] %s159
          %162 = dma.hbm_to_vmem [thread:$0]  %s157, 128, %s160, %s149
        $region28: #{tpu_custom_call.1} parent=23 // pred_fallthru
          _
      $region24: #{tpu_custom_call.1} parent=5 // pred_fallthru
        _
      %p163 = scmp.le.s32.totalorder 1, %s16
      %p164 = scmp.lt.s32.totalorder %s16, 3
      %p165 = pnand %p163, %p164
      %p166 = pneg %p165
      // Predicated region
      $region29: #{tpu_custom_call.1} parent=5 // pred_check
        _
      $region30: #{tpu_custom_call.1} parent=5 // pred_check_branch
        %168 = sbr.rel (%p165) target = $region32
      $region31: #{tpu_custom_call.1} parent=5 // pred_region
        %s169 = ssub.s32 %s16, 1
        %s170 = sand.u32 %s29, 1
        %s171 = scalar_lea.sflag [#allocation3], %s170
        %s172 = sand.u32 %s29, 1
        %s173 = smul.addr %s172, 8
        %s174 = scalar_lea.vmem [#allocation2], %s173
        // Predicated region
        $region33: #{tpu_custom_call.1} parent=31 // pred_check
          %p175 = pneg %p42
        $region34: #{tpu_custom_call.1} parent=31 // pred_check_branch
          %177 = sbr.rel (%p175) target = $region36
        $region35: #{tpu_custom_call.1} parent=31 // pred_region
          %178 = dma.done %s171, 128
        $region36: #{tpu_custom_call.1} parent=31 // pred_fallthru
          _
        // Predicated region
        $region37: #{tpu_custom_call.1} parent=31 // pred_check
          %p179 = pneg %p63
        $region38: #{tpu_custom_call.1} parent=31 // pred_check_branch
          %181 = sbr.rel (%p179) target = $region40
        $region39: #{tpu_custom_call.1} parent=31 // pred_region
          %182 = dma.done [#allocation6], 512
        $region40: #{tpu_custom_call.1} parent=31 // pred_fallthru
          _
        %s183 = sand.u32 %s29, 1
        %s184 = scalar_lea.sflag [#allocation3], %s183
        %s185 = sand.u32 %s29, 1
        %s186 = smul.addr %s185, 8
        %s187 = scalar_lea.vmem [#allocation2], %s186
        %p188 = pneg %p42
        %p189 = pneg %p39
        %p190 = pneg %p63
        %p191 = pneg %p60
        %p192 = pneg %p84
        %p193 = pneg %p81
        %p194 = pneg %p110
        %p195 = pneg %p107
        %s196 = sand.u32 %s97, 1
        %s197 = scalar_lea.sflag [#allocation4], %s196
        %s198 = sand.u32 %s97, 1
        %s199 = smul.addr %s198, 8
        %s200 = scalar_lea.vmem [#allocation7], %s199
        %v201 = vld [vmem:[%s174] sm:$0xff]
        %v202 = vld [vmem:[#allocation5] sm:$0xff]
        %v203 = vld [vmem:[#allocation5 + $0x8] sm:$0xff]
        %v204 = vld [vmem:[#allocation5 + $0x10] sm:$0xff]
        %v205 = vld [vmem:[#allocation5 + $0x18] sm:$0xff]
        %v206 = vld [vmem:[%s2] sm:$0x1]
        %v208 = vlaneseq
        %v209 = vshrl.u32 %v208, 7
        %v210 = vsub.s32 0, %v209
        %v211 = vrot.slane %v206, %v210
        %vm213 = vcmask 261120
        %v215 = vsel %vm213, %v201, 0
        %217 = vmatprep.subr.mxu0 0.0
        %218 = vmatpush1.msra.mxu0 0.0
        %219 = vmatprep.subr.mxu0 0.0
        %220 = vmatpush1.msra.mxu0 0.0
        %221 = vmatprep.subr.mxu0 0.0
        %222 = vmatpush1.msra.mxu0 0.0
        %223 = vmatprep.subr.mxu0 0.0
        %224 = vmatpush1.msra.mxu0 0.0
        %225 = vmatprep.subr.mxu0 0.0
        %226 = vmatpush1.msra.mxu0 0.0
        %227 = vmatprep.subr.mxu0 0.0
        %228 = vmatpush1.msra.mxu0 0.0
        %229 = vmatprep.subr.mxu0 0.0
        %230 = vmatpush1.msra.mxu0 0.0
        %231 = vmatprep.subr.mxu0 0.0
        %232 = vmatpush1.msra.mxu0 0.0
        %233 = vmatprep.subr.mxu0 0.0
        %234 = vmatpush1.msra.mxu0 0.0
        %235 = vmatprep.subr.mxu0 0.0
        %236 = vmatpush1.msra.mxu0 0.0
        %237 = vmatprep.subr.mxu0 0.0
        %238 = vmatpush1.msra.mxu0 0.0
        %239 = vmatprep.subr.mxu0 0.0
        %240 = vmatpush1.msra.mxu0 0.0
        %241 = vmatprep.subr.mxu0 0.0
        %242 = vmatpush1.msra.mxu0 %v205
        %243 = vmatprep.subr.mxu0 0.0
        %244 = vmatpush1.msra.mxu0 %v204
        %245 = vmatprep.subr.mxu0 0.0
        %246 = vmatpush1.msra.mxu0 %v203
        %247 = vmatprep.subr.mxu0 0.0
        %248 = vmatpush1.msra.mxu0 %v202
        %249 = vmatprep.subr.mxu0 0.0
        %250 = vmatpush2.msra.mxu0 0.0
        %251 = vmatprep.subr.mxu0 0.0
        %252 = vmatpush2.msra.mxu0 0.0
        %253 = vmatprep.subr.mxu0 0.0
        %254 = vmatpush2.msra.mxu0 0.0
        %255 = vmatprep.subr.mxu0 0.0
        %256 = vmatpush2.msra.mxu0 0.0
        %257 = vmatprep.subr.mxu0 0.0
        %258 = vmatpush2.msra.mxu0 0.0
        %259 = vmatprep.subr.mxu0 0.0
        %260 = vmatpush2.msra.mxu0 0.0
        %261 = vmatprep.subr.mxu0 0.0
        %262 = vmatpush2.msra.mxu0 0.0
        %263 = vmatprep.subr.mxu0 0.0
        %264 = vmatpush2.msra.mxu0 0.0
        %265 = vmatprep.subr.mxu0 0.0
        %266 = vmatpush2.msra.mxu0 0.0
        %267 = vmatprep.subr.mxu0 0.0
        %268 = vmatpush2.msra.mxu0 0.0
        %269 = vmatprep.subr.mxu0 0.0
        %270 = vmatpush2.msra.mxu0 0.0
        %271 = vmatprep.subr.mxu0 0.0
        %272 = vmatpush2.msra.mxu0 0.0
        %273 = vmatprep.subr.mxu0 0.0
        %274 = vmatpush2.msra.mxu0 0.0
        %275 = vmatprep.subr.mxu0 0.0
        %276 = vmatpush2.msra.mxu0 0.0
        %277 = vmatprep.subr.mxu0 0.0
        %278 = vmatpush2.msra.mxu0 0.0
        %279 = vmatprep.subr.mxu0 0.0
        %280 = vmatpush2.msra.mxu0 0.0
        %281 = vmatprep.mubr.f32.mxu0 0.0
        %282 = vmatmul.mubr.f32.gmra.mxu0 %v215
        %v283 = vpop.f32.mrf.mxu0
        %v284 = vadd.f32 %v211, %v283
        %v285 = vpop.f32.mrf.mxu0
        %286 = vdwg.mxu0
        %v287 = vadd.f32 %v284, %v201
        %288 = vst.msk [vmem:[%s200] sm:$0xff] %vm213, %v287
        %s289 = sand.u32 %s97, 1
        %s290 = scalar_lea.sflag [#allocation4], %s289
        %s291 = sand.u32 %s97, 1
        %s292 = smul.addr %s291, 8
        %s293 = scalar_lea.vmem [#allocation7], %s292
        // Predicated region
        $region41: #{tpu_custom_call.1} parent=31 // pred_check
          %p294 = pneg %p107
        $region42: #{tpu_custom_call.1} parent=31 // pred_check_branch
          %296 = sbr.rel (%p294) target = $region44
        $region43: #{tpu_custom_call.1} parent=31 // pred_region
          %s298 = ssub.s32 128, 128
          %299 = vsyncadd %s290, %s298
          %s300 = smul.addr %s21, 128
          %s301 = scalar_lea.hbm %s3, %s300
          %s303 = sshll.u32 %s293, 4
          %s304 = int_to_ptr.vmem [resolvable:$true] %s303
          %306 = dma.vmem_to_hbm [thread:$0]  %s304, 128, %s301, %s290
        $region44: #{tpu_custom_call.1} parent=31 // pred_fallthru
          _
      $region32: #{tpu_custom_call.1} parent=5 // pred_fallthru
        _
      %p307 = scmp.le.s32.totalorder 2, %s16
      // Predicated region
      $region45: #{tpu_custom_call.1} parent=5 // pred_check
        %p308 = pneg %p307
      $region46: #{tpu_custom_call.1} parent=5 // pred_check_branch
        %310 = sbr.rel (%p308) target = $region48
      $region47: #{tpu_custom_call.1} parent=5 // pred_region
        %s311 = ssub.s32 %s16, 2
        // Predicated region
        $region49: #{tpu_custom_call.1} parent=47 // pred_check
          %p312 = pneg %p113
        $region50: #{tpu_custom_call.1} parent=47 // pred_check_branch
          %314 = sbr.rel (%p312) target = $region52
        $region51: #{tpu_custom_call.1} parent=47 // pred_region
          %s315 = sand.u32 %s98, 1
          %s316 = scalar_lea.sflag [#allocation4], %s315
          %s317 = sand.u32 %s98, 1
          %s318 = smul.addr %s317, 8
          %s319 = scalar_lea.vmem [#allocation7], %s318
          %320 = dma.done %s316, 128
        $region52: #{tpu_custom_call.1} parent=47 // pred_fallthru
          _
      $region48: #{tpu_custom_call.1} parent=5 // pred_fallthru
        _
    $region6: #{tpu_custom_call.1} parent=1 // loop_footer
      %s20 = sadd.s32 1, %s16
    $region7: #{tpu_custom_call.1} parent=1 // loop_footer_branch
      %15 = sbr.rel target = $region3
    $region8: #{tpu_custom_call.1} parent=1 // loop_exit
      _
    %321 = vsyncpa [#allocation3], 1
    %s322 = scalar_lea.sflag [#allocation3], 1
    %323 = vsyncpa %s322, 1
    %324 = vsyncpa [#allocation6], 1
    %325 = vsyncpa [#allocation4], 1
    %s326 = scalar_lea.sflag [#allocation4], 1
    %327 = vsyncpa %s326, 1

</llo_original>
